<compile_context>
chip_gen: v7x
topology: tpu7x:2x2x1
jax: 0.10.0
libtpu: 0.0.40
codegen_flags: <defaults>
</compile_context>

<pallas_src>
import jax
import jax.numpy as jnp
from jax.experimental import pallas as pl
from jax.experimental.pallas import tpu as pltpu

LANE = 128          # TPU lane width: hidden and output padded to multiples
NEG_LARGE = -1e30   # bias for padded logit lanes -> exp() underflows to 0


def _round_up(x, m):
    return ((x + m - 1) // m) * m


def _vmem_capacity_bytes():
    """Per-generation VMEM capacity (falls back to a safe 64 MiB)."""
    try:
        return int(pltpu.get_tpu_info().vmem_capacity_bytes)
    except Exception:
        return 64 * 1024 * 1024


def mlp_kernel(x_ref, w1_ref, b1_ref, w2_ref, b2_ref, out_ref):
    # x arrives as float32; cast to bf16 on the VPU (free under a mem-bound
    # regime) so HBM only ever carries the 4 B/elem original.
    x = x_ref[...].astype(jnp.bfloat16)

    # --- linear1: bf16 MXU matmul, fp32 accumulate; bias + ReLU in fp32 -----
    h = jnp.dot(x, w1_ref[...], preferred_element_type=jnp.float32)
    h = jnp.maximum(h + b1_ref[...], 0.0)            # (TB, n_hid_pad) fp32

    # --- linear2: cast h to bf16 for the MXU, accumulate in fp32 ------------
    logits = jnp.dot(h.astype(w2_ref.dtype), w2_ref[...],
                     preferred_element_type=jnp.float32)
    logits = logits + b2_ref[...]                    # padded lanes get -1e30 (fp32 only!)

    # --- log_softmax over last axis (numerically stable, fp32) --------------
    m = jnp.max(logits, axis=-1, keepdims=True)
    shifted = logits - m
    lse = jnp.log(jnp.sum(jnp.exp(shifted), axis=-1, keepdims=True))
    out_ref[...] = (shifted - lse).astype(out_ref.dtype)


def prepare_params(w1, b1, w2, b2):
    """One-time parameter prep: cast to bf16, pad n_hidden and n_out to 128.

    w1: (n_in, n_hidden)   b1: (n_hidden,)
    w2: (n_hidden, n_out)  b2: (n_out,)

    Padded hidden columns of W1 / rows of W2 and padded b1 entries are zero,
    so padded hidden units are exactly 0 through ReLU and contribute nothing.
    Padded output lanes carry a -1e30 bias so they vanish from log_softmax.
    """
    n_in, n_hidden = w1.shape
    n_out = w2.shape[1]
    n_hid_pad = _round_up(max(n_hidden, LANE), LANE)
    n_out_pad = _round_up(max(n_out, LANE), LANE)

    w1_bf = jnp.zeros((n_in, n_hid_pad), jnp.bfloat16).at[:, :n_hidden].set(
        w1.astype(jnp.bfloat16))
    b1_row = jnp.zeros((1, n_hid_pad), jnp.float32).at[0, :n_hidden].set(
        b1.astype(jnp.float32))
    w2_bf = jnp.zeros((n_hid_pad, n_out_pad), jnp.bfloat16)
    w2_bf = w2_bf.at[:n_hidden, :n_out].set(w2.astype(jnp.bfloat16))
    b2_row = jnp.full((1, n_out_pad), NEG_LARGE, jnp.float32).at[0, :n_out].set(
        b2.astype(jnp.float32))

    return {"w1": w1_bf, "b1": b1_row, "w2": w2_bf, "b2": b2_row,
            "n_out": n_out}


def simple_neural_net(x, params, *, return_padded=False):
    """Forward pass matching PyTorch SimpleNeuralNet.forward.

    x: any shape (B, ...) -- flattened to (B, n_in) like x.view(x.size(0), -1)
    returns: (B, n_out) float32 log-probabilities, or the lane-padded
             (B, n_out_pad) buffer if return_padded=True (lets the consumer
             fuse/skip the slice pass).
    """
    B = x.shape[0]
    x2d = x.reshape(B, -1)                             # flatten only; stay f32
    if x2d.dtype != jnp.float32:
        x2d = x2d.astype(jnp.float32)
    n_in = x2d.shape[1]

    w1, b1, w2, b2 = params["w1"], params["b1"], params["w2"], params["b2"]
    n_hid_pad = w1.shape[1]
    n_out_pad = w2.shape[1]
    n_out = params["n_out"]
    assert b2.dtype == jnp.float32  # -1e30 padded-lane trick requires fp32

    # -------- VMEM budgeting (per-generation) --------------------------------
    vmem_cap = _vmem_capacity_bytes()
    budget = int(0.75 * vmem_cap)
    # Resident weights + sublane-padded bias rows (bf16 weights, f32 biases).
    fixed_bytes = (n_in * n_hid_pad * 2 + n_hid_pad * n_out_pad * 2
                   + 8 * (n_hid_pad + n_out_pad) * 4)
    # Double-buffered streaming tiles: x (f32) in, out (f32) out, per row.
    per_row_bytes = 2 * n_in * 4 + 2 * n_out_pad * 4
    # TODO(synk): if fixed_bytes alone exceeds ~40% of v7x VMEM (huge n_in /
    # n_hidden), add a K-reduction grid axis over n_in chunks with a VMEM f32
    # accumulator instead of keeping W1 fully resident.

    out_shape = jax.ShapeDtypeStruct((B, n_out_pad), jnp.float32)

    # -------- small-batch fast path: whole problem fits in VMEM, no grid -----
    single_block_bytes = fixed_bytes + B * (n_in * 4 + n_out_pad * 4)
    if single_block_bytes <= budget and B <= 1024:
        out_padded = pl.pallas_call(
            mlp_kernel,
            out_shape=out_shape,
        )(x2d, w1, b1, w2, b2)
        return out_padded if return_padded else out_padded[:, :n_out]

    # -------- batch-tiled pipelined path --------------------------------------
    headroom = budget - fixed_bytes
    if headroom <= per_row_bytes * 8:
        tb_fit = 8
    else:
        tb_fit = (headroom // per_row_bytes // 8) * 8
    TB = max(8, min(2048, int(tb_fit)))                # big tiles, 8-aligned
    TB = min(TB, B)
    num_steps = pl.cdiv(B, TB)

    in_specs = [
        pl.BlockSpec((TB, n_in), lambda i: (i, 0)),            # streamed f32 x
        pl.BlockSpec((n_in, n_hid_pad), lambda i: (0, 0)),     # resident W1
        pl.BlockSpec((1, n_hid_pad), lambda i: (0, 0)),
        pl.BlockSpec((n_hid_pad, n_out_pad), lambda i: (0, 0)),  # resident W2
        pl.BlockSpec((1, n_out_pad), lambda i: (0, 0)),
    ]
    out_specs = pl.BlockSpec((TB, n_out_pad), lambda i: (i, 0))  # lane-dense

    footprint = fixed_bytes + per_row_bytes * TB
    vmem_limit = int(min(int(0.9 * vmem_cap),
                         max(4 * 1024 * 1024, int(1.2 * footprint))))

    cost = pl.CostEstimate(
        flops=2 * B * (n_in * n_hid_pad + n_hid_pad * n_out_pad),
        transcendentals=B * (n_out_pad + 1),           # exp per lane + log
        bytes_accessed=(B * n_in * 4                   # x read as f32
                        + w1.size * 2 + w2.size * 2
                        + b1.size * 4 + b2.size * 4
                        + B * n_out_pad * 4),          # f32 padded writeback
    )

    out_padded = pl.pallas_call(
        mlp_kernel,
        out_shape=out_shape,
        grid=(num_steps,),
        in_specs=in_specs,
        out_specs=out_specs,
        compiler_params=pltpu.CompilerParams(
            # "parallel" shards the batch across TCs where supported; switch
            # to pltpu.CORE_PARALLEL if a v7x profile shows single-TC use.
            dimension_semantics=("parallel",),
            vmem_limit_bytes=vmem_limit,
        ),
        cost_estimate=cost,
    )(x2d, w1, b1, w2, b2)

    return out_padded if return_padded else out_padded[:, :n_out]


if __name__ == "__main__":
    # Small shapes consistent with the module's forward:
    #   x of shape (2, 4, 4, 4) -> flattened n_in = 64
    B, C, H, W = 2, 4, 4, 4
    n_in = C * H * W          # 64
    n_hidden = 32
    n_out = 16

    key = jax.random.PRNGKey(0)
    kx, kw1, kb1, kw2, kb2 = jax.random.split(key, 5)

    x = jax.random.normal(kx, (B, C, H, W), dtype=jnp.float32)

    # Parameter init mimicking nn.Linear's U(-1/sqrt(fan_in), 1/sqrt(fan_in)).
    lim1 = 1.0 / jnp.sqrt(jnp.float32(n_in))
    lim2 = 1.0 / jnp.sqrt(jnp.float32(n_hidden))
    w1 = jax.random.uniform(kw1, (n_in, n_hidden), minval=-lim1, maxval=lim1,
                            dtype=jnp.float32)
    b1 = jax.random.uniform(kb1, (n_hidden,), minval=-lim1, maxval=lim1,
                            dtype=jnp.float32)
    w2 = jax.random.uniform(kw2, (n_hidden, n_out), minval=-lim2, maxval=lim2,
                            dtype=jnp.float32)
    b2 = jax.random.uniform(kb2, (n_out,), minval=-lim2, maxval=lim2,
                            dtype=jnp.float32)

    params = prepare_params(w1, b1, w2, b2)            # one-time prep
    out = simple_neural_net(x, params)
    out = jax.block_until_ready(out)

    # Reference with the same bf16-input / fp32-accumulate matmul recipe.
    # (Results differ from a pure fp32 torch forward at ~1e-3 relative.)
    x2d = x.reshape(B, -1)
    h_ref = jnp.dot(x2d.astype(jnp.bfloat16), w1.astype(jnp.bfloat16),
                    preferred_element_type=jnp.float32) + b1
    h_ref = jnp.maximum(h_ref, 0.0)
    logits_ref = jnp.dot(h_ref.astype(jnp.bfloat16), w2.astype(jnp.bfloat16),
                         preferred_element_type=jnp.float32) + b2
    ref = jax.nn.log_softmax(logits_ref, axis=-1)

    assert out.shape == (B, n_out)
    assert out.dtype == jnp.float32
    assert jnp.allclose(out, ref, atol=1e-3, rtol=1e-3)

    print("KERNEL_OK")
</pallas_src>

<mosaic_0001>
module attributes {stable_mosaic.version = 11 : i64} {
  func.func @mlp_kernel(%arg0: memref<2x64xf32, #tpu.memory_space<vmem>>, %arg1: memref<64x128xbf16, #tpu.memory_space<vmem>>, %arg2: memref<1x128xf32, #tpu.memory_space<vmem>>, %arg3: memref<128x128xbf16, #tpu.memory_space<vmem>>, %arg4: memref<1x128xf32, #tpu.memory_space<vmem>>, %arg5: memref<2x128xf32, #tpu.memory_space<vmem>>) attributes {dimension_semantics = [], scalar_prefetch = 0 : i64, scratch_operands = 0 : i64, tpu.core_type = #tpu.core_type<tc>} {
    %c0 = arith.constant 0 : index
    %c0_0 = arith.constant 0 : index
    %0 = vector.load %arg0[%c0, %c0_0] : memref<2x64xf32, #tpu.memory_space<vmem>>, vector<2x64xf32>
    %1 = arith.truncf %0 : vector<2x64xf32> to vector<2x64xbf16>
    %c0_1 = arith.constant 0 : index
    %c0_2 = arith.constant 0 : index
    %2 = vector.load %arg1[%c0_1, %c0_2] : memref<64x128xbf16, #tpu.memory_space<vmem>>, vector<64x128xbf16>
    %cst = arith.constant dense<0.000000e+00> : vector<2x128xf32>
    %3 = tpu.matmul %1, %2, %cst {dimension_numbers = #tpu.dot_dimension_numbers<[1], [0], [0], [1], [0, 0, 1, 1], [], []>} : vector<2x64xbf16>, vector<64x128xbf16>, vector<2x128xf32> -> vector<2x128xf32>
    %c0_3 = arith.constant 0 : index
    %c0_4 = arith.constant 0 : index
    %4 = vector.load %arg2[%c0_3, %c0_4] : memref<1x128xf32, #tpu.memory_space<vmem>>, vector<1x128xf32>
    %5 = vector.broadcast %4 : vector<1x128xf32> to vector<2x128xf32>
    %6 = arith.addf %3, %5 : vector<2x128xf32>
    %cst_5 = arith.constant 0.000000e+00 : f32
    %7 = vector.broadcast %cst_5 : f32 to vector<2x128xf32>
    %8 = arith.maximumf %6, %7 : vector<2x128xf32>
    %9 = arith.truncf %8 : vector<2x128xf32> to vector<2x128xbf16>
    %c0_6 = arith.constant 0 : index
    %c0_7 = arith.constant 0 : index
    %10 = vector.load %arg3[%c0_6, %c0_7] : memref<128x128xbf16, #tpu.memory_space<vmem>>, vector<128x128xbf16>
    %cst_8 = arith.constant dense<0.000000e+00> : vector<2x128xf32>
    %11 = tpu.matmul %9, %10, %cst_8 {dimension_numbers = #tpu.dot_dimension_numbers<[1], [0], [0], [1], [0, 0, 1, 1], [], []>} : vector<2x128xbf16>, vector<128x128xbf16>, vector<2x128xf32> -> vector<2x128xf32>
    %c0_9 = arith.constant 0 : index
    %c0_10 = arith.constant 0 : index
    %12 = vector.load %arg4[%c0_9, %c0_10] : memref<1x128xf32, #tpu.memory_space<vmem>>, vector<1x128xf32>
    %13 = vector.broadcast %12 : vector<1x128xf32> to vector<2x128xf32>
    %14 = arith.addf %11, %13 : vector<2x128xf32>
    %cst_11 = arith.constant dense<0xFF800000> : vector<2xf32>
    %15 = vector.multi_reduction <maximumf>, %14, %cst_11 [1] : vector<2x128xf32> to vector<2xf32>
    %16 = vector.shape_cast %15 : vector<2xf32> to vector<2x1xf32>
    %17 = vector.broadcast %16 : vector<2x1xf32> to vector<2x128xf32>
    %18 = arith.subf %14, %17 : vector<2x128xf32>
    %19 = math.exp %18 : vector<2x128xf32>
    %cst_12 = arith.constant dense<0.000000e+00> : vector<2xf32>
    %20 = vector.multi_reduction <add>, %19, %cst_12 [1] : vector<2x128xf32> to vector<2xf32>
    %21 = vector.shape_cast %20 : vector<2xf32> to vector<2x1xf32>
    %22 = math.log %21 : vector<2x1xf32>
    %23 = vector.broadcast %22 : vector<2x1xf32> to vector<2x128xf32>
    %24 = arith.subf %18, %23 : vector<2x128xf32>
    %c0_13 = arith.constant 0 : index
    %c0_14 = arith.constant 0 : index
    %25 = vector.load %arg5[%c0_13, %c0_14] : memref<2x128xf32, #tpu.memory_space<vmem>>, vector<2x128xf32>
    tpu.vector_store %arg5[%c0_13, %c0_14], %24 {strides = array<i32>} : memref<2x128xf32, #tpu.memory_space<vmem>>, vector<2x128xf32>,
    return
  }
}

</mosaic_0001>

<llo_original>
// kernel: tpu_custom_call.1
$region0: #{tpu_custom_call.1}
  #allocation0 [shape = 'u32[]', space=smem, size = 0x4, offset = 0x4, fixed_abs, tag = 'smem constant byte address 0x4 - core index']
  #allocation1 [shape = 'u32[144,128]{1,0:T(1,128)}', space=vmem, size = 0x12000, scoped, tag = 'internal scratch']
  %s0 = inlined_call_operand.hbm [shape: f32[2,64], index: 0, kind: input, shape index: {}]
  %s1 = inlined_call_operand.hbm [shape: bf16[64,128], index: 1, kind: input, shape index: {}]
  %s2 = inlined_call_operand.vmem [shape: f32[1,128], index: 2, kind: input, shape index: {}]
  %s3 = inlined_call_operand.hbm [shape: bf16[128,128], index: 3, kind: input, shape index: {}]
  %s4 = inlined_call_operand.vmem [shape: f32[1,128], index: 4, kind: input, shape index: {}]
  %s5 = inlined_call_operand.hbm [shape: f32[2,128], index: 5, kind: output, shape index: {}]
  %s6 = sld [smem:[#allocation0]]
  $region42: #{tpu_custom_call.1} parent=0
    _
  %s8 = ssub.s32 1, %s6
  %s9 = scalar_select 0, %s8, %s6
  $region1: #{tpu_custom_call.1} parent=0
    #allocation2 [shape = 'u8[1024]{0}', space=vmem, size = 0x400, scoped, tag = 'input window, operand 0, single buffered']
    #allocation3 [shape = 's32[1]{0}', space=sflag, size = 0x4, scoped, tag = 'scoped memory for tpu_custom_call.1']
    #allocation4 [shape = 's32[1]{0}', space=sflag, size = 0x4, scoped, tag = 'scoped memory for tpu_custom_call.1']
    #allocation5 [shape = 'u8[16384]{0}', space=vmem, size = 0x4000, scoped, tag = 'input window, operand 1, single buffered']
    #allocation6 [shape = 's32[1]{0}', space=sflag, size = 0x4, scoped, tag = 'scoped memory for tpu_custom_call.1']
    #allocation7 [shape = 'u8[32768]{0}', space=vmem, size = 0x8000, scoped, tag = 'input window, operand 3, single buffered']
    #allocation8 [shape = 'u8[1024]{0}', space=vmem, size = 0x400, scoped, tag = 'output window, operand 0, single buffered']
    %10 = vsyncpa [#allocation3], 0
    %11 = vsyncpa [#allocation6], 0
    %12 = vsyncpa [#allocation4], 0
    // Predicated region
    $region2: #{tpu_custom_call.1} parent=1 // pred_check
      _
    $region3: #{tpu_custom_call.1} parent=1 // pred_check_branch
      %14 = sbr.rel (0) target = $region5
    $region4: #{tpu_custom_call.1} parent=1 // pred_region
      %s16 = ssub.s32 32, 32
      %17 = vsyncadd [#allocation3], %s16
      %s19 = sshll.u32 [#allocation2], 4
      %s20 = int_to_ptr.vmem [resolvable:$true] %s19
      %22 = dma.hbm_to_vmem [thread:$0]  %s0, 32, %s20, [#allocation3]
    $region5: #{tpu_custom_call.1} parent=1 // pred_fallthru
      _
    // Predicated region
    $region6: #{tpu_custom_call.1} parent=1 // pred_check
      _
    $region7: #{tpu_custom_call.1} parent=1 // pred_check_branch
      %24 = sbr.rel (0) target = $region9
    $region8: #{tpu_custom_call.1} parent=1 // pred_region
      %s26 = ssub.s32 512, 512
      %27 = vsyncadd [#allocation6], %s26
      %s28 = sshll.u32 [#allocation5], 4
      %s29 = int_to_ptr.vmem [resolvable:$true] %s28
      %34 = dma.hbm_to_vmem [thread:$0]  %s1, 512, %s29, [#allocation6], 64, 64, 4
    $region9: #{tpu_custom_call.1} parent=1 // pred_fallthru
      _
    // Predicated region
    $region10: #{tpu_custom_call.1} parent=1 // pred_check
      _
    $region11: #{tpu_custom_call.1} parent=1 // pred_check_branch
      %36 = sbr.rel (0) target = $region13
    $region12: #{tpu_custom_call.1} parent=1 // pred_region
      _
    $region13: #{tpu_custom_call.1} parent=1 // pred_fallthru
      _
    // Predicated region
    $region14: #{tpu_custom_call.1} parent=1 // pred_check
      _
    $region15: #{tpu_custom_call.1} parent=1 // pred_check_branch
      %38 = sbr.rel (0) target = $region17
    $region16: #{tpu_custom_call.1} parent=1 // pred_region
      %s40 = ssub.s32 1024, 1024
      %41 = vsyncadd [#allocation6], %s40
      %s42 = sshll.u32 [#allocation7], 4
      %s43 = int_to_ptr.vmem [resolvable:$true] %s42
      %48 = dma.hbm_to_vmem [thread:$0]  %s3, 1024, %s43, [#allocation6], 64, 64, 4
    $region17: #{tpu_custom_call.1} parent=1 // pred_fallthru
      _
    // Predicated region
    $region18: #{tpu_custom_call.1} parent=1 // pred_check
      _
    $region19: #{tpu_custom_call.1} parent=1 // pred_check_branch
      %50 = sbr.rel (0) target = $region21
    $region20: #{tpu_custom_call.1} parent=1 // pred_region
      _
    $region21: #{tpu_custom_call.1} parent=1 // pred_fallthru
      _
    // Predicated region
    $region22: #{tpu_custom_call.1} parent=1 // pred_check
      _
    $region23: #{tpu_custom_call.1} parent=1 // pred_check_branch
      %52 = sbr.rel (0) target = $region25
    $region24: #{tpu_custom_call.1} parent=1 // pred_region
      %53 = dma.done [#allocation3], 32
    $region25: #{tpu_custom_call.1} parent=1 // pred_fallthru
      _
    // Predicated region
    $region26: #{tpu_custom_call.1} parent=1 // pred_check
      _
    $region27: #{tpu_custom_call.1} parent=1 // pred_check_branch
      %55 = sbr.rel (0) target = $region29
    $region28: #{tpu_custom_call.1} parent=1 // pred_region
      %56 = dma.done [#allocation6], 512
    $region29: #{tpu_custom_call.1} parent=1 // pred_fallthru
      _
    // Predicated region
    $region30: #{tpu_custom_call.1} parent=1 // pred_check
      _
    $region31: #{tpu_custom_call.1} parent=1 // pred_check_branch
      %58 = sbr.rel (0) target = $region33
    $region32: #{tpu_custom_call.1} parent=1 // pred_region
      %59 = dma.done [#allocation6], 1024
    $region33: #{tpu_custom_call.1} parent=1 // pred_fallthru
      _
    %v61 = vld [vmem:[#allocation2] sm:$0x3]
    %v62 = vpack.c.bf16 %v61, %v61
    %v63 = vld [vmem:[#allocation5] sm:$0xf]
    %v64 = vld [vmem:[#allocation5 + $0x4] sm:$0xf]
    %v65 = vld [vmem:[#allocation5 + $0x8] sm:$0xf]
    %v66 = vld [vmem:[#allocation5 + $0xc] sm:$0xf]
    %v67 = vld [vmem:[#allocation5 + $0x10] sm:$0xf]
    %v68 = vld [vmem:[#allocation5 + $0x14] sm:$0xf]
    %v69 = vld [vmem:[#allocation5 + $0x18] sm:$0xf]
    %v70 = vld [vmem:[#allocation5 + $0x1c] sm:$0xf]
    %v71 = vld [vmem:[%s2] sm:$0x1]
    %v73 = vlaneseq
    %v74 = vshrl.u32 %v73, 7
    %v75 = vsub.s32 0, %v74
    %v76 = vrot.slane %v71, %v75
    %v86 = vunpack.c.l.b16 %v63
    %v87 = vunpack.c.l.b16 %v64
    %v88 = vunpack.c.l.b16 %v65
    %v89 = vunpack.c.l.b16 %v66
    %v90 = vunpack.c.l.b16 %v67
    %v91 = vunpack.c.l.b16 %v68
    %v92 = vunpack.c.l.b16 %v69
    %v93 = vunpack.c.l.b16 %v70
    %v94 = vpack.c.b16 %v87, %v86
    %v95 = vpack.c.b16 %v89, %v88
    %v96 = vpack.c.b16 %v91, %v90
    %v97 = vpack.c.b16 %v93, %v92
    %vm102 = vcmask 523264
    %v104 = vsel %vm102, %v62, 0
    %106 = vmatprep.subr.bf16.mxu0 0
    %107 = vmatpush1.bf16.msra.mxu0 %v94
    %108 = vmatprep.subr.bf16.mxu0 0
    %109 = vmatpush1.bf16.msra.mxu0 %v95
    %110 = vmatprep.subr.bf16.mxu0 0
    %111 = vmatpush1.bf16.msra.mxu0 %v96
    %112 = vmatprep.subr.bf16.mxu0 0
    %113 = vmatpush1.bf16.msra.mxu0 %v97
    %114 = vmatprep.subr.bf16.mxu0 0
    %115 = vmatpush1.bf16.msra.mxu0 0
    %116 = vmatprep.subr.bf16.mxu0 0
    %117 = vmatpush1.bf16.msra.mxu0 0
    %118 = vmatprep.subr.bf16.mxu0 0
    %119 = vmatpush1.bf16.msra.mxu0 0
    %120 = vmatprep.subr.bf16.mxu0 0
    %121 = vmatpush1.bf16.msra.mxu0 0
    %122 = vmatprep.subr.bf16.mxu0 0
    %123 = vmatpush1.bf16.msra.mxu0 0
    %124 = vmatprep.subr.bf16.mxu0 0
    %125 = vmatpush1.bf16.msra.mxu0 0
    %126 = vmatprep.subr.bf16.mxu0 0
    %127 = vmatpush1.bf16.msra.mxu0 0
    %128 = vmatprep.subr.bf16.mxu0 0
    %129 = vmatpush1.bf16.msra.mxu0 0
    %130 = vmatprep.subr.bf16.mxu0 0
    %131 = vmatpush1.bf16.msra.mxu0 0
    %132 = vmatprep.subr.bf16.mxu0 0
    %133 = vmatpush1.bf16.msra.mxu0 0
    %134 = vmatprep.subr.bf16.mxu0 0
    %135 = vmatpush1.bf16.msra.mxu0 0
    %136 = vmatprep.subr.bf16.mxu0 0
    %137 = vmatpush1.bf16.msra.mxu0 0
    %138 = vmatprep.mubr.bf16.mxu0 0
    %139 = vmatmul.mubr.bf16.gmra.mrb[0].mxu0 %v104
    %v140 = vpop.f32.mrb[0].mxu0
    %v141 = vadd.f32 %v76, %v140
    %v142 = vpop.f32.mrb[0].mxu0
    %v143 = vpop.f32.mrb[0].mxu0
    %v144 = vpop.f32.mrb[0].mxu0
    %145 = vdwg.mxu0
    %v146 = vmax.f32 %v141, 0.0
    %v147 = vpack.c.bf16 %v146, %v146
    %v148 = vld [vmem:[#allocation7] sm:$0xf]
    %v149 = vld [vmem:[#allocation7 + $0x4] sm:$0xf]
    %v150 = vld [vmem:[#allocation7 + $0x8] sm:$0xf]
    %v151 = vld [vmem:[#allocation7 + $0xc] sm:$0xf]
    %v152 = vld [vmem:[#allocation7 + $0x10] sm:$0xf]
    %v153 = vld [vmem:[#allocation7 + $0x14] sm:$0xf]
    %v154 = vld [vmem:[#allocation7 + $0x18] sm:$0xf]
    %v155 = vld [vmem:[#allocation7 + $0x1c] sm:$0xf]
    %v156 = vld [vmem:[#allocation7 + $0x20] sm:$0xf]
    %v157 = vld [vmem:[#allocation7 + $0x24] sm:$0xf]
    %v158 = vld [vmem:[#allocation7 + $0x28] sm:$0xf]
    %v159 = vld [vmem:[#allocation7 + $0x2c] sm:$0xf]
    %v160 = vld [vmem:[#allocation7 + $0x30] sm:$0xf]
    %v161 = vld [vmem:[#allocation7 + $0x34] sm:$0xf]
    %v162 = vld [vmem:[#allocation7 + $0x38] sm:$0xf]
    %v163 = vld [vmem:[#allocation7 + $0x3c] sm:$0xf]
    %v164 = vld [vmem:[%s4] sm:$0x1]
    %v166 = vlaneseq
    %v167 = vshrl.u32 %v166, 7
    %v168 = vsub.s32 0, %v167
    %v169 = vrot.slane %v164, %v168
    %v187 = vunpack.c.l.b16 %v148
    %v188 = vunpack.c.l.b16 %v149
    %v189 = vunpack.c.l.b16 %v150
    %v190 = vunpack.c.l.b16 %v151
    %v191 = vunpack.c.l.b16 %v152
    %v192 = vunpack.c.l.b16 %v153
    %v193 = vunpack.c.l.b16 %v154
    %v194 = vunpack.c.l.b16 %v155
    %v195 = vunpack.c.l.b16 %v156
    %v196 = vunpack.c.l.b16 %v157
    %v197 = vunpack.c.l.b16 %v158
    %v198 = vunpack.c.l.b16 %v159
    %v199 = vunpack.c.l.b16 %v160
    %v200 = vunpack.c.l.b16 %v161
    %v201 = vunpack.c.l.b16 %v162
    %v202 = vunpack.c.l.b16 %v163
    %v203 = vpack.c.b16 %v188, %v187
    %v204 = vpack.c.b16 %v190, %v189
    %v205 = vpack.c.b16 %v192, %v191
    %v206 = vpack.c.b16 %v194, %v193
    %v207 = vpack.c.b16 %v196, %v195
    %v208 = vpack.c.b16 %v198, %v197
    %v209 = vpack.c.b16 %v200, %v199
    %v210 = vpack.c.b16 %v202, %v201
    %219 = vmatprep.subr.bf16.mxu0 0
    %220 = vmatpush1.bf16.msra.mxu0 %v203
    %221 = vmatprep.subr.bf16.mxu0 0
    %222 = vmatpush1.bf16.msra.mxu0 %v204
    %223 = vmatprep.subr.bf16.mxu0 0
    %224 = vmatpush1.bf16.msra.mxu0 %v205
    %225 = vmatprep.subr.bf16.mxu0 0
    %226 = vmatpush1.bf16.msra.mxu0 %v206
    %227 = vmatprep.subr.bf16.mxu0 0
    %228 = vmatpush1.bf16.msra.mxu0 %v207
    %229 = vmatprep.subr.bf16.mxu0 0
    %230 = vmatpush1.bf16.msra.mxu0 %v208
    %231 = vmatprep.subr.bf16.mxu0 0
    %232 = vmatpush1.bf16.msra.mxu0 %v209
    %233 = vmatprep.subr.bf16.mxu0 0
    %234 = vmatpush1.bf16.msra.mxu0 %v210
    %235 = vmatprep.subr.bf16.mxu0 0
    %236 = vmatpush1.bf16.msra.mxu0 0
    %237 = vmatprep.subr.bf16.mxu0 0
    %238 = vmatpush1.bf16.msra.mxu0 0
    %239 = vmatprep.subr.bf16.mxu0 0
    %240 = vmatpush1.bf16.msra.mxu0 0
    %241 = vmatprep.subr.bf16.mxu0 0
    %242 = vmatpush1.bf16.msra.mxu0 0
    %243 = vmatprep.subr.bf16.mxu0 0
    %244 = vmatpush1.bf16.msra.mxu0 0
    %245 = vmatprep.subr.bf16.mxu0 0
    %246 = vmatpush1.bf16.msra.mxu0 0
    %247 = vmatprep.subr.bf16.mxu0 0
    %248 = vmatpush1.bf16.msra.mxu0 0
    %249 = vmatprep.subr.bf16.mxu0 0
    %250 = vmatpush1.bf16.msra.mxu0 0
    %251 = vmatprep.mubr.bf16.mxu0 0
    %252 = vmatmul.mubr.bf16.gmra.mrb[0].mxu0 %v147
    %v253 = vpop.f32.mrb[0].mxu0
    %v254 = vadd.f32 %v169, %v253
    %v255 = vpop.f32.mrb[0].mxu0
    %v256 = vpop.f32.mrb[0].mxu0
    %v257 = vpop.f32.mrb[0].mxu0
    %258 = vdwg.mxu0
    %vm259 = vcmask 1041408
    %v260 = vsel %vm259, %v254, -inf
    %261 = vmax.xlane.f32.xlu0 %v260
    %v262 = vpop.xlane.xlu0 %261
    %v263 = vsub.f32 %v254, %v262
    %v264 = vmul.f32 %v263, 1.442695
    %v265 = vpow.pop %v264
    %v266 = vsel %vm259, %v265, 0.0
    %267 = vadd.xlane.f32.xlu0 %v266
    %v268 = vpop.xlane.xlu0 %267
    %v269 = vlog2.pop %v268
    %v270 = vmul.f32 %v269, 0.6931472
    %v271 = vsub.f32 %v263, %v270
    %272 = vst [vmem:[#allocation8] sm:$0x3] %v271
    // Predicated region
    $region34: #{tpu_custom_call.1} parent=1 // pred_check
      _
    $region35: #{tpu_custom_call.1} parent=1 // pred_check_branch
      %274 = sbr.rel (0) target = $region37
    $region36: #{tpu_custom_call.1} parent=1 // pred_region
      %s276 = ssub.s32 32, 32
      %277 = vsyncadd [#allocation4], %s276
      %s279 = sshll.u32 [#allocation8], 4
      %s280 = int_to_ptr.vmem [resolvable:$true] %s279
      %282 = dma.vmem_to_hbm [thread:$0]  %s280, 32, %s5, [#allocation4]
    $region37: #{tpu_custom_call.1} parent=1 // pred_fallthru
      _
    // Predicated region
    $region38: #{tpu_custom_call.1} parent=1 // pred_check
      _
    $region39: #{tpu_custom_call.1} parent=1 // pred_check_branch
      %284 = sbr.rel (0) target = $region41
    $region40: #{tpu_custom_call.1} parent=1 // pred_region
      %285 = dma.done [#allocation4], 32
    $region41: #{tpu_custom_call.1} parent=1 // pred_fallthru
      _
    %286 = vsyncpa [#allocation3], 1
    %287 = vsyncpa [#allocation6], 1
    %288 = vsyncpa [#allocation4], 1

</llo_original>
